<compile_context>
chip_gen: v6e
topology: v6e:2x2x1
jax: 0.10.0
libtpu: 0.0.40
codegen_flags: <defaults>
</compile_context>

<pallas_src>
import jax
import jax.numpy as jnp
from jax.experimental import pallas as pl
from jax.experimental.pallas import tpu as pltpu

# Grid-less single-block path only for truly small inputs (<= 128 KiB),
# where pipeline overlap cannot pay for itself anyway.
_SINGLE_BLOCK_BYTES = 128 * 1024
# Target bytes per tile for the gridded large-input path (~2 MiB).
_TARGET_TILE_BYTES = 2 << 20


def _relu_kernel(x_ref, o_ref):
    # Elementwise ReLU on the whole VMEM tile; dtype-matched zero scalar.
    x = x_ref[...]
    o_ref[...] = jnp.maximum(x, jnp.zeros((), x.dtype))


@jax.jit
def pallas_relu(x: jax.Array) -> jax.Array:
    """ReLU as a Pallas TPU kernel. Layout-preserving: only leading dims are
    collapsed, the native minor dim is kept so no relayout copy is emitted."""
    orig_shape = x.shape
    dtype = x.dtype
    if x.size == 0:
        return x

    # Collapse leading dims, keep the minor dim (layout-preserving reshape).
    if x.ndim >= 2:
        x2d = x.reshape(-1, orig_shape[-1])
    else:
        x2d = x.reshape(1, -1)
    rows, cols = x2d.shape
    itemsize = x2d.dtype.itemsize
    total_bytes = rows * cols * itemsize

    if total_bytes <= _SINGLE_BLOCK_BYTES or rows < 8:
        # ---- tiny path: one full-array block, no grid, no pipeline steps ----
        out2d = pl.pallas_call(
            _relu_kernel,
            out_shape=jax.ShapeDtypeStruct((rows, cols), dtype),
            in_specs=[pl.BlockSpec(memory_space=pltpu.MemorySpace.VMEM)],
            out_specs=pl.BlockSpec(memory_space=pltpu.MemorySpace.VMEM),
        )(x2d)
        return out2d.reshape(orig_shape)

    # ---- large path: ~2 MiB row tiles, ragged tail clipped by Pallas ----
    bytes_per_row = cols * itemsize
    tile_rows = (_TARGET_TILE_BYTES // max(1, bytes_per_row)) // 8 * 8
    tile_rows = max(8, min(tile_rows, rows))
    grid = (pl.cdiv(rows, tile_rows),)

    out2d = pl.pallas_call(
        _relu_kernel,
        out_shape=jax.ShapeDtypeStruct((rows, cols), dtype),
        grid=grid,
        in_specs=[pl.BlockSpec((tile_rows, cols), lambda i: (i, 0))],
        out_specs=pl.BlockSpec((tile_rows, cols), lambda i: (i, 0)),
        compiler_params=pltpu.CompilerParams(
            # TODO(synk): on v7x, CORE_PARALLEL would shard the grid across
            # both TensorCores; kept generation-agnostic "parallel" here.
            dimension_semantics=(pltpu.PARALLEL,),
        ),
        cost_estimate=pl.CostEstimate(
            flops=rows * cols,
            bytes_accessed=2 * rows * cols * itemsize,
            transcendentals=0,
        ),
    )(x2d)
    return out2d.reshape(orig_shape)


class SimpleTest:
    """JAX analogue of TorchSimpleTest: holds a parameter `x`, forward = relu(x)."""

    def __init__(self, shape, key):
        # torch.randn -> standard normal init, deterministic via PRNGKey.
        self.x = jax.random.normal(key, shape, dtype=jnp.float32)

    def forward(self):
        return pallas_relu(self.x)


if __name__ == "__main__":
    key = jax.random.PRNGKey(0)
    shape = (2, 4, 16, 16)  # B, C, H, W — small, consistent with the module

    model = SimpleTest(shape, key)
    y = model.forward()
    jax.block_until_ready(y)

    # Sanity check against plain JAX reference.
    ref = jnp.maximum(model.x, 0.0)
    assert y.shape == shape
    assert y.dtype == model.x.dtype
    assert jnp.allclose(y, ref), "Pallas ReLU mismatch vs reference"

    # Also exercise the gridded large path once (incl. ragged tail) for safety.
    big = jax.random.normal(jax.random.PRNGKey(1), (1000, 3, 136), dtype=jnp.float32)
    yb = pallas_relu(big)
    jax.block_until_ready(yb)
    assert jnp.allclose(yb, jnp.maximum(big, 0.0)), "Pallas ReLU (large path) mismatch"

    print("KERNEL_OK")
</pallas_src>

<mosaic_0001>
module attributes {stable_mosaic.version = 11 : i64} {
  func.func @_relu_kernel(%arg0: memref<128x16xf32, #tpu.memory_space<vmem>>, %arg1: memref<128x16xf32, #tpu.memory_space<vmem>>) attributes {dimension_semantics = [], scalar_prefetch = 0 : i64, scratch_operands = 0 : i64, tpu.core_type = #tpu.core_type<tc>} {
    %c0 = arith.constant 0 : index
    %c0_0 = arith.constant 0 : index
    %0 = vector.load %arg0[%c0, %c0_0] : memref<128x16xf32, #tpu.memory_space<vmem>>, vector<128x16xf32>
    %cst = arith.constant 0.000000e+00 : f32
    %1 = vector.broadcast %cst : f32 to vector<128x16xf32>
    %2 = arith.maximumf %0, %1 : vector<128x16xf32>
    %c0_1 = arith.constant 0 : index
    %c0_2 = arith.constant 0 : index
    %3 = vector.load %arg1[%c0_1, %c0_2] : memref<128x16xf32, #tpu.memory_space<vmem>>, vector<128x16xf32>
    tpu.vector_store %arg1[%c0_1, %c0_2], %2 {strides = array<i32>} : memref<128x16xf32, #tpu.memory_space<vmem>>, vector<128x16xf32>,
    return
  }
}

</mosaic_0001>

<llo_original>
// kernel: pallas_relu.1
$region0: #{pallas_relu.1}
  #allocation0 [shape = 'u32[]', space=smem, size = 0x4, offset = 0x4, fixed_abs, tag = 'smem constant byte address 0x4 - core index']
  #allocation1 [shape = 'u32[144,128]{1,0:T(1,128)}', space=vmem, size = 0x12000, scoped, tag = 'internal scratch']
  %s0 = inlined_call_operand.hbm [shape: f32[128,16], index: 0, kind: input, shape index: {}]
  %s1 = inlined_call_operand.hbm [shape: f32[128,16], index: 1, kind: output, shape index: {}]
  %s2 = sld [smem:[#allocation0]]
  $region18: #{pallas_relu.1} parent=0
    _
  %s4 = ssub.s32 1, %s2
  %s5 = scalar_select 0, %s4, %s2
  $region1: #{pallas_relu.1} parent=0
    #allocation2 [shape = 'u8[65536]{0}', space=vmem, size = 0x10000, scoped, tag = 'input window, operand 0, single buffered']
    #allocation3 [shape = 's32[1]{0}', space=sflag, size = 0x4, scoped, tag = 'scoped memory for pallas_relu.1']
    #allocation4 [shape = 's32[1]{0}', space=sflag, size = 0x4, scoped, tag = 'scoped memory for pallas_relu.1']
    #allocation5 [shape = 'u8[65536]{0}', space=vmem, size = 0x10000, scoped, tag = 'output window, operand 0, single buffered']
    %6 = vsyncpa [#allocation3], 0
    %7 = vsyncpa [#allocation4], 0
    // Predicated region
    $region2: #{pallas_relu.1} parent=1 // pred_check
      _
    $region3: #{pallas_relu.1} parent=1 // pred_check_branch
      %9 = sbr.rel (0) target = $region5
    $region4: #{pallas_relu.1} parent=1 // pred_region
      %s11 = ssub.s32 2048, 2048
      %12 = vsyncadd [#allocation3], %s11
      %s13 = sshll.u32 [#allocation2], 4
      %s14 = int_to_ptr.vmem [resolvable:$true] %s13
      %19 = dma.hbm_to_vmem [thread:$0]  %s0, 2048, %s14, [#allocation3], 128, 128, 8
    $region5: #{pallas_relu.1} parent=1 // pred_fallthru
      _
    // Predicated region
    $region6: #{pallas_relu.1} parent=1 // pred_check
      _
    $region7: #{pallas_relu.1} parent=1 // pred_check_branch
      %21 = sbr.rel (0) target = $region9
    $region8: #{pallas_relu.1} parent=1 // pred_region
      %22 = dma.done [#allocation3], 2048
    $region9: #{pallas_relu.1} parent=1 // pred_fallthru
      _
    %v23 = vld [vmem:[#allocation2] sm:$0xff]
    %v24 = vld [vmem:[#allocation2 + $0x8] sm:$0xff]
    %v25 = vld [vmem:[#allocation2 + $0x10] sm:$0xff]
    %v26 = vld [vmem:[#allocation2 + $0x18] sm:$0xff]
    %v27 = vld [vmem:[#allocation2 + $0x20] sm:$0xff]
    %v28 = vld [vmem:[#allocation2 + $0x28] sm:$0xff]
    %v29 = vld [vmem:[#allocation2 + $0x30] sm:$0xff]
    %v30 = vld [vmem:[#allocation2 + $0x38] sm:$0xff]
    %v31 = vld [vmem:[#allocation2 + $0x40] sm:$0xff]
    %v32 = vld [vmem:[#allocation2 + $0x48] sm:$0xff]
    %v33 = vld [vmem:[#allocation2 + $0x50] sm:$0xff]
    %v34 = vld [vmem:[#allocation2 + $0x58] sm:$0xff]
    %v35 = vld [vmem:[#allocation2 + $0x60] sm:$0xff]
    %v36 = vld [vmem:[#allocation2 + $0x68] sm:$0xff]
    %v37 = vld [vmem:[#allocation2 + $0x70] sm:$0xff]
    %v38 = vld [vmem:[#allocation2 + $0x78] sm:$0xff]
    %v39 = vmax.f32 %v23, 0.0
    %v40 = vmax.f32 %v24, 0.0
    %v41 = vmax.f32 %v25, 0.0
    %v42 = vmax.f32 %v26, 0.0
    %v43 = vmax.f32 %v27, 0.0
    %v44 = vmax.f32 %v28, 0.0
    %v45 = vmax.f32 %v29, 0.0
    %v46 = vmax.f32 %v30, 0.0
    %v47 = vmax.f32 %v31, 0.0
    %v48 = vmax.f32 %v32, 0.0
    %v49 = vmax.f32 %v33, 0.0
    %v50 = vmax.f32 %v34, 0.0
    %v51 = vmax.f32 %v35, 0.0
    %v52 = vmax.f32 %v36, 0.0
    %v53 = vmax.f32 %v37, 0.0
    %v54 = vmax.f32 %v38, 0.0
    %vm55 = vcmask 130048
    %56 = vst.msk [vmem:[#allocation5] sm:$0xff] %vm55, %v39
    %57 = vst.msk [vmem:[#allocation5 + $0x8] sm:$0xff] %vm55, %v40
    %58 = vst.msk [vmem:[#allocation5 + $0x10] sm:$0xff] %vm55, %v41
    %59 = vst.msk [vmem:[#allocation5 + $0x18] sm:$0xff] %vm55, %v42
    %60 = vst.msk [vmem:[#allocation5 + $0x20] sm:$0xff] %vm55, %v43
    %61 = vst.msk [vmem:[#allocation5 + $0x28] sm:$0xff] %vm55, %v44
    %62 = vst.msk [vmem:[#allocation5 + $0x30] sm:$0xff] %vm55, %v45
    %63 = vst.msk [vmem:[#allocation5 + $0x38] sm:$0xff] %vm55, %v46
    %64 = vst.msk [vmem:[#allocation5 + $0x40] sm:$0xff] %vm55, %v47
    %65 = vst.msk [vmem:[#allocation5 + $0x48] sm:$0xff] %vm55, %v48
    %66 = vst.msk [vmem:[#allocation5 + $0x50] sm:$0xff] %vm55, %v49
    %67 = vst.msk [vmem:[#allocation5 + $0x58] sm:$0xff] %vm55, %v50
    %68 = vst.msk [vmem:[#allocation5 + $0x60] sm:$0xff] %vm55, %v51
    %69 = vst.msk [vmem:[#allocation5 + $0x68] sm:$0xff] %vm55, %v52
    %70 = vst.msk [vmem:[#allocation5 + $0x70] sm:$0xff] %vm55, %v53
    %71 = vst.msk [vmem:[#allocation5 + $0x78] sm:$0xff] %vm55, %v54
    // Predicated region
    $region10: #{pallas_relu.1} parent=1 // pred_check
      _
    $region11: #{pallas_relu.1} parent=1 // pred_check_branch
      %73 = sbr.rel (0) target = $region13
    $region12: #{pallas_relu.1} parent=1 // pred_region
      %s75 = ssub.s32 2048, 2048
      %76 = vsyncadd [#allocation4], %s75
      %s77 = sshll.u32 [#allocation5], 4
      %s78 = int_to_ptr.vmem [resolvable:$true] %s77
      %83 = dma.vmem_to_hbm [thread:$0]  %s78, 2048, %s1, [#allocation4], 128, 128, 8
    $region13: #{pallas_relu.1} parent=1 // pred_fallthru
      _
    // Predicated region
    $region14: #{pallas_relu.1} parent=1 // pred_check
      _
    $region15: #{pallas_relu.1} parent=1 // pred_check_branch
      %85 = sbr.rel (0) target = $region17
    $region16: #{pallas_relu.1} parent=1 // pred_region
      %86 = dma.done [#allocation4], 2048
    $region17: #{pallas_relu.1} parent=1 // pred_fallthru
      _
    %87 = vsyncpa [#allocation3], 1
    %88 = vsyncpa [#allocation4], 1

</llo_original>
